<compile_context>
chip_gen: v7x
topology: tpu7x:2x2x1
jax: 0.10.0
libtpu: 0.0.40
codegen_flags: <defaults>
</compile_context>

<pallas_src>
import functools

import jax
import jax.numpy as jnp
from jax.experimental import pallas as pl
from jax.experimental.pallas import tpu as pltpu


def _round_up(x, m):
    return ((x + m - 1) // m) * m


def _tile_budget():
    """(max lane-tile, vmem_limit_bytes) respecting the chip's VMEM capacity.

    Steady-state footprint is ~192 B per lane column of TILE:
      logits (padded to 8 sublanes, f32, double-buffered)   64 * TILE
      targets (padded to 8 sublanes, i32, double-buffered)  64 * TILE
      two (C, TILE) f32 accumulators (padded to 8 sublanes) 64 * TILE
    """
    try:
        cap = pltpu.get_tpu_info().vmem_capacity_bytes
    except Exception:  # pragma: no cover - be conservative if query unavailable
        cap = 64 << 20  # v7x per-TensorCore VMEM
    vmem_limit = int(min(48 << 20, (cap * 3) // 4))
    max_tile = (vmem_limit // 2) // 192          # keep 2x headroom under limit
    max_tile = max(128, (max_tile // 128) * 128)  # lane-aligned
    max_tile = min(max_tile, 131072)
    return max_tile, vmem_limit


def _ce_kernel(logits_ref, tgt_ref, wts_ref, loss_ref, wsum_ref,
               acc_loss, acc_w, *, hw, tile_hw):
    t_i = pl.program_id(1)

    # Per-image accumulator init (megacore-safe: state never crosses an image).
    @pl.when(t_i == 0)
    def _():
        acc_loss[...] = jnp.zeros_like(acc_loss)
        acc_w[...] = jnp.zeros_like(acc_w)

    x = logits_ref[0].astype(jnp.float32)     # (C, TILE)  cast in-kernel
    t = tgt_ref[0].astype(jnp.int32)          # (1, TILE)
    w = wts_ref[...].astype(jnp.float32)      # (C, 1)     resident

    c, thw = x.shape

    if hw % tile_hw != 0:
        # Partial last tile: out-of-range lanes hold undefined data. Force
        # logits to a finite value (0) and targets to the ignore value (-1)
        # so they contribute exactly 0 to both accumulators.
        lane = jax.lax.broadcasted_iota(jnp.int32, (1, thw), 1)
        valid = (t_i * tile_hw + lane) < hw
        x = jnp.where(valid, x, 0.0)
        t = jnp.where(valid, t, -1)

    cls = jax.lax.broadcasted_iota(jnp.int32, (c, thw), 0)
    # Negative targets (padding / ignore_index) match no class row -> weight 0,
    # dropping out of numerator and denominator.  (Targets >= C are likewise
    # silently ignored, whereas torch would raise.)
    onehot = (cls == t).astype(jnp.float32)   # (C, TILE)
    wo = w * onehot                            # (C, TILE)

    # Numerically-stable logsumexp over the class (sublane) axis.
    mmax = jnp.max(x, axis=0, keepdims=True)                                  # (1, TILE)
    lse = jnp.log(jnp.sum(jnp.exp(x - mmax), axis=0, keepdims=True)) + mmax   # (1, TILE)

    # Class-row accumulation: pure elementwise VPU adds; no per-step sublane
    # reductions beyond the two inside the logsumexp.
    acc_loss[...] = acc_loss[...] + wo * (lse - x)
    acc_w[...] = acc_w[...] + wo

    @pl.when(t_i == pl.num_programs(1) - 1)
    def _():
        loss_ref[...] = jnp.sum(acc_loss[...], keepdims=True).reshape(1, 1, 1)
        wsum_ref[...] = jnp.sum(acc_w[...], keepdims=True).reshape(1, 1, 1)


def _weighted_ce_sums(logits_nchw, target_nhw, class_weights):
    """Per-image (sum of w_t * nll, sum of w_t) for NCHW logits / NHW targets."""
    n, c, h, w = logits_nchw.shape
    hw = h * w

    max_tile, vmem_limit = _tile_budget()
    tile_hw = min(max_tile, _round_up(hw, 128))
    n_tiles = pl.cdiv(hw, tile_hw)

    # Zero-copy reshapes; logits keep their producer dtype (cast in-kernel),
    # integer targets are passed through without a materialising cast.
    logits = logits_nchw.reshape(n, c, hw)
    if not jnp.issubdtype(target_nhw.dtype, jnp.integer):
        target_nhw = target_nhw.astype(jnp.int32)
    targets = target_nhw.reshape(n, 1, hw)
    wts = class_weights.reshape(c, 1).astype(jnp.float32)

    kern = functools.partial(_ce_kernel, hw=hw, tile_hw=tile_hw)

    bytes_accessed = int(n * hw * (c * logits.dtype.itemsize
                                   + targets.dtype.itemsize)
                         + c * 4 + 2 * n * 4)
    cost = pl.CostEstimate(
        flops=10 * n * c * hw,
        transcendentals=n * hw * (c + 1),
        bytes_accessed=bytes_accessed,
    )

    # TODO(synk): optionally sweep pipeline_mode=pl.Buffered(3) on the logits
    # BlockSpec on v6e (<=5% expected; costs an extra 32*TILE bytes of VMEM).
    sum_loss, sum_w = pl.pallas_call(
        kern,
        out_shape=(jax.ShapeDtypeStruct((n, 1, 1), jnp.float32),
                   jax.ShapeDtypeStruct((n, 1, 1), jnp.float32)),
        grid_spec=pltpu.PrefetchScalarGridSpec(
            num_scalar_prefetch=0,
            grid=(n, n_tiles),
            in_specs=[
                pl.BlockSpec((1, c, tile_hw), lambda i, j: (i, 0, j)),
                pl.BlockSpec((1, 1, tile_hw), lambda i, j: (i, 0, j)),
                pl.BlockSpec((c, 1), lambda i, j: (0, 0)),
            ],
            out_specs=[
                pl.BlockSpec((1, 1, 1), lambda i, j: (i, 0, 0)),
                pl.BlockSpec((1, 1, 1), lambda i, j: (i, 0, 0)),
            ],
            scratch_shapes=[
                pltpu.VMEM((c, tile_hw), jnp.float32),
                pltpu.VMEM((c, tile_hw), jnp.float32),
            ],
        ),
        compiler_params=pltpu.CompilerParams(
            dimension_semantics=("parallel", "arbitrary"),
            vmem_limit_bytes=vmem_limit),
        cost_estimate=cost,
    )(logits, targets, wts)

    return sum_loss.reshape(n), sum_w.reshape(n)


def _small_grid(pred):
    """Fusing pred/pred_s only pays when launch overhead dominates."""
    n, _, h, w = pred.shape
    max_tile, _ = _tile_budget()
    tile = min(max_tile, _round_up(h * w, 128))
    steps = n * pl.cdiv(h * w, tile)
    return steps <= 16


class CELossPallas:
    """JAX/Pallas port of tools/loss.py::CELoss."""

    def __init__(self, weights, num_classes=4):
        self.num_classes = num_classes
        self.weights = jnp.asarray(weights).reshape(1, num_classes, 1, 1)

    def __call__(self, pred, target, pred_s, target_s):
        if pred.ndim > 4:
            pred = jnp.mean(pred, axis=0)
        w_flat = self.weights.reshape(-1)

        if pred_s is None:
            sl, sw = _weighted_ce_sums(pred, target, w_flat)
            # weighted 'mean': divide by sum of selected weights (NaN if 0,
            # matching torch).
            return jnp.sum(sl) / jnp.sum(sw)

        fuse = (pred_s.shape == pred.shape and pred_s.dtype == pred.dtype
                and target_s.shape == target.shape
                and target_s.dtype == target.dtype and _small_grid(pred))
        if fuse:
            # One pallas_call for both losses: concat along N, split the
            # per-image partial sums and normalise each loss separately.
            n1 = pred.shape[0]
            sl, sw = _weighted_ce_sums(
                jnp.concatenate([pred, pred_s], axis=0),
                jnp.concatenate([target, target_s], axis=0),
                w_flat)
            k = jnp.sum(sl[:n1]) / jnp.sum(sw[:n1])
            ks = jnp.sum(sl[n1:]) / jnp.sum(sw[n1:])
            return ks + k

        sl1, sw1 = _weighted_ce_sums(pred, target, w_flat)
        sl2, sw2 = _weighted_ce_sums(pred_s, target_s, w_flat)
        return jnp.sum(sl2) / jnp.sum(sw2) + jnp.sum(sl1) / jnp.sum(sw1)


def _reference_weighted_ce(logits_nchw, target_nhw, class_weights):
    # pure-JAX reference of torch.nn.CrossEntropyLoss(weight=w)
    logp = jax.nn.log_softmax(logits_nchw.astype(jnp.float32), axis=1)
    oh = jax.nn.one_hot(target_nhw, logits_nchw.shape[1], axis=1)
    nll = -jnp.sum(logp * oh, axis=1)
    w_t = class_weights[target_nhw]
    return jnp.sum(w_t * nll) / jnp.sum(w_t)


if __name__ == "__main__":
    key = jax.random.PRNGKey(0)
    k1, k2, k3, k4, k5 = jax.random.split(key, 5)

    N, C, H, W = 2, 4, 16, 16
    class_weights = jnp.array([1.0, 2.0, 0.5, 1.5], dtype=jnp.float32)

    pred = jax.random.normal(k1, (N, C, H, W), dtype=jnp.float32)
    target = jax.random.randint(k2, (N, H, W), 0, C, dtype=jnp.int32)
    pred_s = jax.random.normal(k3, (N, C, H, W), dtype=jnp.float32)
    target_s = jax.random.randint(k4, (N, H, W), 0, C, dtype=jnp.int32)

    loss_mod = CELossPallas(class_weights, num_classes=C)

    # fused (pred + pred_s) path
    out = jax.block_until_ready(loss_mod(pred, target, pred_s, target_s))
    ref = (_reference_weighted_ce(pred, target, class_weights)
           + _reference_weighted_ce(pred_s, target_s, class_weights))
    assert jnp.allclose(out, ref, rtol=1e-5, atol=1e-5), (out, ref)

    # pred_s is None path
    out_single = jax.block_until_ready(loss_mod(pred, target, None, None))
    ref_single = _reference_weighted_ce(pred, target, class_weights)
    assert jnp.allclose(out_single, ref_single, rtol=1e-5, atol=1e-5), (
        out_single, ref_single)

    # odd spatial size -> exercises the partial-tile lane-mask path
    Ho, Wo = 10, 13
    pred_o = jax.random.normal(k5, (N, C, Ho, Wo), dtype=jnp.float32)
    target_o = jax.random.randint(k2, (N, Ho, Wo), 0, C, dtype=jnp.int32)
    out_o = jax.block_until_ready(loss_mod(pred_o, target_o, None, None))
    ref_o = _reference_weighted_ce(pred_o, target_o, class_weights)
    assert jnp.allclose(out_o, ref_o, rtol=1e-5, atol=1e-5), (out_o, ref_o)

    # 5-D pred (ensemble dim averaged first), as in the torch module
    pred5 = jax.random.normal(k3, (3, N, C, H, W), dtype=jnp.float32)
    out5 = jax.block_until_ready(loss_mod(pred5, target, None, None))
    ref5 = _reference_weighted_ce(jnp.mean(pred5, axis=0), target, class_weights)
    assert jnp.allclose(out5, ref5, rtol=1e-5, atol=1e-5), (out5, ref5)

    print("KERNEL_OK")
</pallas_src>

<mosaic_0001>
module attributes {stable_mosaic.version = 11 : i64} {
  func.func @_ce_kernel(%arg0: i32, %arg1: i32, %arg2: memref<1x4x256xf32, #tpu.memory_space<vmem>>, %arg3: memref<1x1x256xi32, #tpu.memory_space<vmem>>, %arg4: memref<4x1xf32, #tpu.memory_space<vmem>>, %arg5: memref<1x1x1xf32, #tpu.memory_space<vmem>>, %arg6: memref<1x1x1xf32, #tpu.memory_space<vmem>>, %arg7: memref<4x256xf32, #tpu.memory_space<vmem>>, %arg8: memref<4x256xf32, #tpu.memory_space<vmem>>) attributes {dimension_semantics = [#tpu.dimension_semantics<parallel>, #tpu.dimension_semantics<arbitrary>], iteration_bounds = array<i64: 4, 1>, scalar_prefetch = 0 : i64, scratch_operands = 2 : i64, tpu.core_type = #tpu.core_type<tc>, window_params = [{transform_indices = @transform_0, window_bounds = array<i64: 1, 4, 256>}, {transform_indices = @transform_1, window_bounds = array<i64: 1, 1, 256>}, {pipeline_mode = #tpu.pipeline_mode<synchronous>, transform_indices = @transform_2, window_bounds = array<i64: 4, 1>}, {transform_indices = @transform_3, window_bounds = array<i64: 1, 1, 1>}, {transform_indices = @transform_4, window_bounds = array<i64: 1, 1, 1>}]} {
    %c0_i32 = arith.constant 0 : i32
    %0 = arith.cmpi eq, %arg1, %c0_i32 : i32
    %1 = arith.extui %0 : i1 to i32
    %c0_i32_0 = arith.constant 0 : i32
    %2 = arith.cmpi ne, %1, %c0_i32_0 : i32
    scf.if %2 {
      %cst_19 = arith.constant 0.000000e+00 : f32
      %36 = vector.broadcast %cst_19 : f32 to vector<4x256xf32>
      %c0_20 = arith.constant 0 : index
      %c0_21 = arith.constant 0 : index
      %37 = vector.load %arg7[%c0_20, %c0_21] : memref<4x256xf32, #tpu.memory_space<vmem>>, vector<4x256xf32>
      tpu.vector_store %arg7[%c0_20, %c0_21], %36 {strides = array<i32>} : memref<4x256xf32, #tpu.memory_space<vmem>>, vector<4x256xf32>,
      %cst_22 = arith.constant 0.000000e+00 : f32
      %38 = vector.broadcast %cst_22 : f32 to vector<4x256xf32>
      %c0_23 = arith.constant 0 : index
      %c0_24 = arith.constant 0 : index
      %39 = vector.load %arg8[%c0_23, %c0_24] : memref<4x256xf32, #tpu.memory_space<vmem>>, vector<4x256xf32>
      tpu.vector_store %arg8[%c0_23, %c0_24], %38 {strides = array<i32>} : memref<4x256xf32, #tpu.memory_space<vmem>>, vector<4x256xf32>,
    } else {
    }
    %c0 = arith.constant 0 : index
    %c0_1 = arith.constant 0 : index
    %c0_2 = arith.constant 0 : index
    %3 = vector.load %arg2[%c0, %c0_1, %c0_2] : memref<1x4x256xf32, #tpu.memory_space<vmem>>, vector<1x4x256xf32>
    %4 = vector.shape_cast %3 : vector<1x4x256xf32> to vector<4x256xf32>
    %c0_3 = arith.constant 0 : index
    %c0_4 = arith.constant 0 : index
    %c0_5 = arith.constant 0 : index
    %5 = vector.load %arg3[%c0_3, %c0_4, %c0_5] : memref<1x1x256xi32, #tpu.memory_space<vmem>>, vector<1x1x256xi32>
    %6 = vector.shape_cast %5 : vector<1x1x256xi32> to vector<1x256xi32>
    %c0_6 = arith.constant 0 : index
    %c0_7 = arith.constant 0 : index
    %7 = vector.load %arg4[%c0_6, %c0_7] : memref<4x1xf32, #tpu.memory_space<vmem>>, vector<4x1xf32>
    %8 = tpu.iota {dimensions = array<i32: 0>} : vector<4x256xi32>
    %9 = vector.broadcast %6 : vector<1x256xi32> to vector<4x256xi32>
    %10 = arith.cmpi eq, %8, %9 : vector<4x256xi32>
    %11 = arith.extui %10 : vector<4x256xi1> to vector<4x256xi32>
    %12 = arith.sitofp %11 : vector<4x256xi32> to vector<4x256xf32>
    %13 = vector.broadcast %7 : vector<4x1xf32> to vector<4x256xf32>
    %14 = arith.mulf %13, %12 : vector<4x256xf32>
    %cst = arith.constant dense<0xFF800000> : vector<256xf32>
    %15 = vector.multi_reduction <maximumf>, %4, %cst [0] : vector<4x256xf32> to vector<256xf32>
    %16 = vector.shape_cast %15 : vector<256xf32> to vector<1x256xf32>
    %17 = vector.broadcast %16 : vector<1x256xf32> to vector<4x256xf32>
    %18 = arith.subf %4, %17 : vector<4x256xf32>
    %19 = math.exp %18 : vector<4x256xf32>
    %cst_8 = arith.constant dense<0.000000e+00> : vector<256xf32>
    %20 = vector.multi_reduction <add>, %19, %cst_8 [0] : vector<4x256xf32> to vector<256xf32>
    %21 = vector.shape_cast %20 : vector<256xf32> to vector<1x256xf32>
    %22 = math.log %21 : vector<1x256xf32>
    %23 = arith.addf %22, %16 : vector<1x256xf32>
    %c0_9 = arith.constant 0 : index
    %c0_10 = arith.constant 0 : index
    %24 = vector.load %arg7[%c0_9, %c0_10] : memref<4x256xf32, #tpu.memory_space<vmem>>, vector<4x256xf32>
    %25 = vector.broadcast %23 : vector<1x256xf32> to vector<4x256xf32>
    %26 = arith.subf %25, %4 : vector<4x256xf32>
    %27 = arith.mulf %14, %26 : vector<4x256xf32>
    %28 = arith.addf %24, %27 : vector<4x256xf32>
    %c0_11 = arith.constant 0 : index
    %c0_12 = arith.constant 0 : index
    %29 = vector.load %arg7[%c0_11, %c0_12] : memref<4x256xf32, #tpu.memory_space<vmem>>, vector<4x256xf32>
    tpu.vector_store %arg7[%c0_11, %c0_12], %28 {strides = array<i32>} : memref<4x256xf32, #tpu.memory_space<vmem>>, vector<4x256xf32>,
    %c0_13 = arith.constant 0 : index
    %c0_14 = arith.constant 0 : index
    %30 = vector.load %arg8[%c0_13, %c0_14] : memref<4x256xf32, #tpu.memory_space<vmem>>, vector<4x256xf32>
    %31 = arith.addf %30, %14 : vector<4x256xf32>
    %c0_15 = arith.constant 0 : index
    %c0_16 = arith.constant 0 : index
    %32 = vector.load %arg8[%c0_15, %c0_16] : memref<4x256xf32, #tpu.memory_space<vmem>>, vector<4x256xf32>
    tpu.vector_store %arg8[%c0_15, %c0_16], %31 {strides = array<i32>} : memref<4x256xf32, #tpu.memory_space<vmem>>, vector<4x256xf32>,
    %c0_i32_17 = arith.constant 0 : i32
    %33 = arith.cmpi eq, %arg1, %c0_i32_17 : i32
    %34 = arith.extui %33 : i1 to i32
    %c0_i32_18 = arith.constant 0 : i32
    %35 = arith.cmpi ne, %34, %c0_i32_18 : i32
    scf.if %35 {
      %c0_19 = arith.constant 0 : index
      %c0_20 = arith.constant 0 : index
      %36 = vector.load %arg7[%c0_19, %c0_20] : memref<4x256xf32, #tpu.memory_space<vmem>>, vector<4x256xf32>
      %37 = vector.shape_cast %36 : vector<4x256xf32> to vector<1x4x256xf32>
      %cst_21 = arith.constant dense<0.000000e+00> : vector<1xf32>
      %38 = vector.multi_reduction <add>, %37, %cst_21 [1, 2] : vector<1x4x256xf32> to vector<1xf32>
      %39 = vector.shape_cast %38 : vector<1xf32> to vector<1x1x1xf32>
      %40 = vector.extract %39[0, 0, 0] : f32 from vector<1x1x1xf32>
      %41 = vector.broadcast %40 : f32 to vector<1x1xf32>
      %42 = vector.shape_cast %41 : vector<1x1xf32> to vector<1x1x1xf32>
      %c0_22 = arith.constant 0 : index
      %c0_23 = arith.constant 0 : index
      %c0_24 = arith.constant 0 : index
      %43 = vector.load %arg5[%c0_22, %c0_23, %c0_24] : memref<1x1x1xf32, #tpu.memory_space<vmem>>, vector<1x1x1xf32>
      tpu.vector_store %arg5[%c0_22, %c0_23, %c0_24], %42 {strides = array<i32>} : memref<1x1x1xf32, #tpu.memory_space<vmem>>, vector<1x1x1xf32>,
      %c0_25 = arith.constant 0 : index
      %c0_26 = arith.constant 0 : index
      %44 = vector.load %arg8[%c0_25, %c0_26] : memref<4x256xf32, #tpu.memory_space<vmem>>, vector<4x256xf32>
      %45 = vector.shape_cast %44 : vector<4x256xf32> to vector<1x4x256xf32>
      %cst_27 = arith.constant dense<0.000000e+00> : vector<1xf32>
      %46 = vector.multi_reduction <add>, %45, %cst_27 [1, 2] : vector<1x4x256xf32> to vector<1xf32>
      %47 = vector.shape_cast %46 : vector<1xf32> to vector<1x1x1xf32>
      %48 = vector.extract %47[0, 0, 0] : f32 from vector<1x1x1xf32>
      %49 = vector.broadcast %48 : f32 to vector<1x1xf32>
      %50 = vector.shape_cast %49 : vector<1x1xf32> to vector<1x1x1xf32>
      %c0_28 = arith.constant 0 : index
      %c0_29 = arith.constant 0 : index
      %c0_30 = arith.constant 0 : index
      %51 = vector.load %arg6[%c0_28, %c0_29, %c0_30] : memref<1x1x1xf32, #tpu.memory_space<vmem>>, vector<1x1x1xf32>
      tpu.vector_store %arg6[%c0_28, %c0_29, %c0_30], %50 {strides = array<i32>} : memref<1x1x1xf32, #tpu.memory_space<vmem>>, vector<1x1x1xf32>,
    } else {
    }
    return
  }
  func.func @transform_0(%arg0: i32, %arg1: i32) -> (i32, i32, i32) {
    %c0_i32 = arith.constant 0 : i32
    %c0_i32_0 = arith.constant 0 : i32
    return %arg0, %c0_i32, %arg1 : i32, i32, i32
  }
  func.func @transform_1(%arg0: i32, %arg1: i32) -> (i32, i32, i32) {
    %c0_i32 = arith.constant 0 : i32
    %c0_i32_0 = arith.constant 0 : i32
    return %arg0, %c0_i32, %arg1 : i32, i32, i32
  }
  func.func @transform_2(%arg0: i32, %arg1: i32) -> (i32, i32) {
    %c0_i32 = arith.constant 0 : i32
    %c0_i32_0 = arith.constant 0 : i32
    %c0_i32_1 = arith.constant 0 : i32
    return %c0_i32, %c0_i32_0 : i32, i32
  }
  func.func @transform_3(%arg0: i32, %arg1: i32) -> (i32, i32, i32) {
    %c0_i32 = arith.constant 0 : i32
    %c0_i32_0 = arith.constant 0 : i32
    %c0_i32_1 = arith.constant 0 : i32
    return %arg0, %c0_i32, %c0_i32_0 : i32, i32, i32
  }
  func.func @transform_4(%arg0: i32, %arg1: i32) -> (i32, i32, i32) {
    %c0_i32 = arith.constant 0 : i32
    %c0_i32_0 = arith.constant 0 : i32
    %c0_i32_1 = arith.constant 0 : i32
    return %arg0, %c0_i32, %c0_i32_0 : i32, i32, i32
  }
}

</mosaic_0001>

<llo_original>
// kernel: tpu_custom_call.1
$region0: #{tpu_custom_call.1}
  #allocation0 [shape = 'u32[]', space=smem, size = 0x4, offset = 0x4, fixed_abs, tag = 'smem constant byte address 0x4 - core index']
  #allocation1 [shape = 'u32[144,128]{1,0:T(1,128)}', space=vmem, size = 0x12000, scoped, tag = 'internal scratch']
  #allocation2 [shape = 'f32[4,256]{1,0:T(4,128)}', space=vmem, size = 0x1000, scoped, tag = 'scratch operand']
  #allocation3 [shape = 'f32[4,256]{1,0:T(4,128)}', space=vmem, size = 0x1000, scoped, tag = 'scratch operand']
  %s0 = inlined_call_operand.hbm [shape: f32[4,4,256], index: 0, kind: input, shape index: {}]
  %s1 = inlined_call_operand.vmem [shape: s32[4,1,256], index: 1, kind: input, shape index: {}]
  %s2 = inlined_call_operand.vmem [shape: f32[4,1], index: 2, kind: input, shape index: {}]
  %s3 = inlined_call_operand.vmem [shape: f32[4,1,1], index: 3, kind: output, shape index: {0}]
  %s4 = inlined_call_operand.vmem [shape: f32[4,1,1], index: 4, kind: output, shape index: {1}]
  %5 = xla_tuple %s3, %s4
  %s6 = sld [smem:[#allocation0]]
  $region65: #{tpu_custom_call.1} parent=0
    _
  %s8 = ssub.s32 1, %s6
  %s9 = scalar_select 0, %s8, %s6
  $region1: #{tpu_custom_call.1} parent=0
    #allocation4 [shape = 'u8[8192]{0}', space=vmem, size = 0x2000, scoped, tag = 'input window, operand 0']
    #allocation5 [shape = 's32[2]{0}', space=sflag, size = 0x8, scoped, tag = 'scoped memory for tpu_custom_call.1']
    %10 = vsyncpa [#allocation5], 0
    %s11 = scalar_lea.sflag [#allocation5], 1
    %12 = vsyncpa %s11, 0
    loop: start=0, step=1, limit=6
    $region2: #{tpu_custom_call.1} parent=1 // loop_pre_header
      _
    $region3: #{tpu_custom_call.1} parent=1 // loop_header
      %s14 = sphi 0, %s18
      %p15 = scmp.ge.s32.totalorder %s14, 6
      %s21 = sphi 0, %s33
      %s22 = sphi 0, %s29
      %s23 = sphi 0, %s21
      %s24 = sphi 0, %s22
      %s25 = sphi 0, %s23
      %s26 = sphi 0, %s24
      %s38 = sphi 0, %s40
      %s41 = sphi 0, %s38
      %s42 = sphi 0, %s41
      %s58 = sphi 0, %s42
      %s66 = sphi 0, %s68
      %s69 = sphi 0, %s66
      %s70 = sphi 0, %s69
      %s86 = sphi 0, %s70
      %s90 = sphi 0, %s90
      %s92 = sphi 0, %s90
      %s93 = sphi 0, %s92
      %s107 = sphi 0, %s93
      %s113 = sphi 0, %s115
      %s116 = sphi 0, %s113
      %s117 = sphi 0, %s116
      %s133 = sphi 0, %s117
      %s139 = sphi 0, %s141
      %s142 = sphi 0, %s139
      %s143 = sphi 0, %s142
      %s159 = sphi 0, %s143
    $region4: #{tpu_custom_call.1} parent=1 // loop_header_branch
      %17 = sbr.rel (%p15) target = $region8
    $region5: #{tpu_custom_call.1} parent=1 // loop_body
      %s19 = ssub.s32 %s14, 1
      %s20 = ssub.s32 %s14, 2
      %s27 = sadd.s32 1, %s22
      %p28 = scmp.ge.s32.totalorder %s27, 1
      %s29 = scalar_select %p28, 0, %s27
      %s30 = sadd.s32 1, %s21
      %s31 = scalar_select %p28, %s30, %s21
      %p32 = scmp.ge.s32.totalorder %s31, 4
      %s33 = scalar_select %p32, 0, %s31
      %s34 = ssub.s32 %s21, %s33
      %s35 = ssub.s32 %s22, %s29
      %s36 = sor.u32 %s34, %s35
      %p37 = scmp.eq.s32.totalorder %s36, 0
      %s39 = sadd.s32 %s38, 1
      %s40 = scalar_select %p37, %s38, %s39
      %p43 = pneg %p37
      %p44 = scmp.eq.s32.totalorder %s14, 3
      %p45 = por %p43, %p44
      %p46 = scmp.ne.s32.totalorder %s38, %s41
      %p47 = scmp.eq.s32.totalorder %s14, 0
      %p48 = por %p46, %p47
      %p49 = scmp.ne.s32.totalorder %s38, %s41
      %p50 = scmp.eq.s32.totalorder %s19, 3
      %p51 = por %p49, %p50
      %p52 = scmp.ne.s32.totalorder %s41, %s42
      %p53 = scmp.eq.s32.totalorder %s19, 0
      %p54 = por %p52, %p53
      %p55 = scmp.ne.s32.totalorder %s41, %s42
      %p56 = scmp.eq.s32.totalorder %s20, 3
      %p57 = por %p55, %p56
      %p59 = scmp.ne.s32.totalorder %s42, %s58
      %p60 = scmp.eq.s32.totalorder %s20, 0
      %p61 = por %p59, %p60
      %s62 = ssub.s32 %s21, %s33
      %s63 = ssub.s32 %s22, %s29
      %s64 = sor.u32 %s62, %s63
      %p65 = scmp.eq.s32.totalorder %s64, 0
      %s67 = sadd.s32 %s66, 1
      %s68 = scalar_select %p65, %s66, %s67
      %p71 = pneg %p65
      %p72 = scmp.eq.s32.totalorder %s14, 3
      %p73 = por %p71, %p72
      %p74 = scmp.ne.s32.totalorder %s66, %s69
      %p75 = scmp.eq.s32.totalorder %s14, 0
      %p76 = por %p74, %p75
      %p77 = scmp.ne.s32.totalorder %s66, %s69
      %p78 = scmp.eq.s32.totalorder %s19, 3
      %p79 = por %p77, %p78
      %p80 = scmp.ne.s32.totalorder %s69, %s70
      %p81 = scmp.eq.s32.totalorder %s19, 0
      %p82 = por %p80, %p81
      %p83 = scmp.ne.s32.totalorder %s69, %s70
      %p84 = scmp.eq.s32.totalorder %s20, 3
      %p85 = por %p83, %p84
      %p87 = scmp.ne.s32.totalorder %s70, %s86
      %p88 = scmp.eq.s32.totalorder %s20, 0
      %p89 = por %p87, %p88
      %s91 = sadd.s32 %s90, 1
      %p94 = scmp.eq.s32.totalorder %s14, 3
      %p95 = scmp.ne.s32.totalorder %s90, %s92
      %p96 = scmp.eq.s32.totalorder %s14, 0
      %p97 = por %p95, %p96
      %p98 = scmp.ne.s32.totalorder %s90, %s92
      %p99 = scmp.eq.s32.totalorder %s19, 3
      %p100 = por %p98, %p99
      %p101 = scmp.ne.s32.totalorder %s92, %s93
      %p102 = scmp.eq.s32.totalorder %s19, 0
      %p103 = por %p101, %p102
      %p104 = scmp.ne.s32.totalorder %s92, %s93
      %p105 = scmp.eq.s32.totalorder %s20, 3
      %p106 = por %p104, %p105
      %p108 = scmp.ne.s32.totalorder %s93, %s107
      %p109 = scmp.eq.s32.totalorder %s20, 0
      %p110 = por %p108, %p109
      %s111 = ssub.s32 %s21, %s33
      %p112 = scmp.eq.s32.totalorder %s111, 0
      %s114 = sadd.s32 %s113, 1
      %s115 = scalar_select %p112, %s113, %s114
      %p118 = pneg %p112
      %p119 = scmp.eq.s32.totalorder %s14, 3
      %p120 = por %p118, %p119
      %p121 = scmp.ne.s32.totalorder %s113, %s116
      %p122 = scmp.eq.s32.totalorder %s14, 0
      %p123 = por %p121, %p122
      %p124 = scmp.ne.s32.totalorder %s113, %s116
      %p125 = scmp.eq.s32.totalorder %s19, 3
      %p126 = por %p124, %p125
      %p127 = scmp.ne.s32.totalorder %s116, %s117
      %p128 = scmp.eq.s32.totalorder %s19, 0
      %p129 = por %p127, %p128
      %p130 = scmp.ne.s32.totalorder %s116, %s117
      %p131 = scmp.eq.s32.totalorder %s20, 3
      %p132 = por %p130, %p131
      %p134 = scmp.ne.s32.totalorder %s117, %s133
      %p135 = scmp.eq.s32.totalorder %s20, 0
      %p136 = por %p134, %p135
      %s137 = ssub.s32 %s21, %s33
      %p138 = scmp.eq.s32.totalorder %s137, 0
      %s140 = sadd.s32 %s139, 1
      %s141 = scalar_select %p138, %s139, %s140
      %p144 = pneg %p138
      %p145 = scmp.eq.s32.totalorder %s14, 3
      %p146 = por %p144, %p145
      %p147 = scmp.ne.s32.totalorder %s139, %s142
      %p148 = scmp.eq.s32.totalorder %s14, 0
      %p149 = por %p147, %p148
      %p150 = scmp.ne.s32.totalorder %s139, %s142
      %p151 = scmp.eq.s32.totalorder %s19, 3
      %p152 = por %p150, %p151
      %p153 = scmp.ne.s32.totalorder %s142, %s143
      %p154 = scmp.eq.s32.totalorder %s19, 0
      %p155 = por %p153, %p154
      %p156 = scmp.ne.s32.totalorder %s142, %s143
      %p157 = scmp.eq.s32.totalorder %s20, 3
      %p158 = por %p156, %p157
      %p160 = scmp.ne.s32.totalorder %s143, %s159
      %p161 = scmp.eq.s32.totalorder %s20, 0
      %p162 = por %p160, %p161
      %p163 = scmp.le.s32.totalorder 1, %s14
      %p164 = scmp.lt.s32.totalorder %s14, 5
      %p165 = pnand %p163, %p164
      %p166 = pneg %p165
      // Predicated region
      $region9: #{tpu_custom_call.1} parent=5 // pred_check
        _
      $region10: #{tpu_custom_call.1} parent=5 // pred_check_branch
        %168 = sbr.rel (%p165) target = $region12
      $region11: #{tpu_custom_call.1} parent=5 // pred_region
        %s169 = ssub.s32 %s14, 1
        // Predicated region
        $region13: #{tpu_custom_call.1} parent=11 // pred_check
          %p170 = pneg %p103
        $region14: #{tpu_custom_call.1} parent=11 // pred_check_branch
          %172 = sbr.rel (%p170) target = $region16
        $region15: #{tpu_custom_call.1} parent=11 // pred_region
          _
        $region16: #{tpu_custom_call.1} parent=11 // pred_fallthru
          _
      $region12: #{tpu_custom_call.1} parent=5 // pred_fallthru
        _
      %p173 = scmp.lt.s32.totalorder %s14, 4
      // Predicated region
      $region17: #{tpu_custom_call.1} parent=5 // pred_check
        %p174 = pneg %p173
      $region18: #{tpu_custom_call.1} parent=5 // pred_check_branch
        %176 = sbr.rel (%p174) target = $region20
      $region19: #{tpu_custom_call.1} parent=5 // pred_region
        // Predicated region
        $region21: #{tpu_custom_call.1} parent=19 // pred_check
          %p177 = pneg %p48
        $region22: #{tpu_custom_call.1} parent=19 // pred_check_branch
          %179 = sbr.rel (%p177) target = $region24
        $region23: #{tpu_custom_call.1} parent=19 // pred_region
          %s180 = sand.u32 %s38, 1
          %s181 = scalar_lea.sflag [#allocation5], %s180
          %s182 = sand.u32 %s38, 1
          %s183 = smul.addr %s182, 8
          %s184 = scalar_lea.vmem [#allocation4], %s183
          %s185 = smul.u32 2, %s22
          %s187 = ssub.s32 128, 128
          %188 = vsyncadd %s181, %s187
          %s189 = smul.addr %s21, 2
          %s190 = sadd.s32 %s185, %s189
          %s191 = smul.addr %s190, 64
          %s192 = scalar_lea.hbm %s0, %s191
          %s194 = sshll.u32 %s184, 4
          %s195 = int_to_ptr.vmem [resolvable:$true] %s194
          %197 = dma.hbm_to_vmem [thread:$0]  %s192, 128, %s195, %s181
        $region24: #{tpu_custom_call.1} parent=19 // pred_fallthru
          _
        // Predicated region
        $region25: #{tpu_custom_call.1} parent=19 // pred_check
          %p198 = pneg %p76
        $region26: #{tpu_custom_call.1} parent=19 // pred_check_branch
          %200 = sbr.rel (%p198) target = $region28
        $region27: #{tpu_custom_call.1} parent=19 // pred_region
          %s201 = smul.u32 2, %s22
          %p202 = scmp.lt.s32.totalorder %s21, 3
          %s203 = scalar_select %p202, %s21, 3
          %p204 = scmp.lt.s32.totalorder %s201, 1
          %s205 = scalar_select %p204, %s201, 1
          %s206 = smul.addr %s203, 2
          %s207 = sadd.s32 %s205, %s206
          %s208 = scalar_lea.vmem %s1, %s207
          %s209 = smul.u32 2, %s22
        $region28: #{tpu_custom_call.1} parent=19 // pred_fallthru
          _
      $region20: #{tpu_custom_call.1} parent=5 // pred_fallthru
        _
      %p210 = scmp.le.s32.totalorder 1, %s14
      %p211 = scmp.lt.s32.totalorder %s14, 5
      %p212 = pnand %p210, %p211
      %p213 = pneg %p212
      // Predicated region
      $region29: #{tpu_custom_call.1} parent=5 // pred_check
        _
      $region30: #{tpu_custom_call.1} parent=5 // pred_check_branch
        %215 = sbr.rel (%p212) target = $region32
      $region31: #{tpu_custom_call.1} parent=5 // pred_region
        %s216 = ssub.s32 %s14, 1
        %s217 = sand.u32 %s41, 1
        %s218 = scalar_lea.sflag [#allocation5], %s217
        %s219 = sand.u32 %s41, 1
        %s220 = smul.addr %s219, 8
        %s221 = scalar_lea.vmem [#allocation4], %s220
        // Predicated region
        $region33: #{tpu_custom_call.1} parent=31 // pred_check
          %p222 = pneg %p54
        $region34: #{tpu_custom_call.1} parent=31 // pred_check_branch
          %224 = sbr.rel (%p222) target = $region36
        $region35: #{tpu_custom_call.1} parent=31 // pred_region
          %225 = dma.done %s218, 128
        $region36: #{tpu_custom_call.1} parent=31 // pred_fallthru
          _
        %s226 = sand.u32 %s41, 1
        %s227 = scalar_lea.sflag [#allocation5], %s226
        %s228 = sand.u32 %s41, 1
        %s229 = smul.addr %s228, 8
        %s230 = scalar_lea.vmem [#allocation4], %s229
        %p231 = pneg %p54
        %p232 = pneg %p51
        %s233 = smul.u32 2, %s24
        %p234 = scmp.lt.s32.totalorder %s23, 3
        %s235 = scalar_select %p234, %s23, 3
        %p236 = scmp.lt.s32.totalorder %s233, 1
        %s237 = scalar_select %p236, %s233, 1
        %s238 = smul.addr %s235, 2
        %s239 = sadd.s32 %s237, %s238
        %s240 = scalar_lea.vmem %s1, %s239
        %p241 = pneg %p82
        %p242 = pneg %p79
        %p243 = pneg %p103
        %p244 = pneg %p100
        %p245 = pneg %p129
        %p246 = pneg %p126
        %p247 = scmp.lt.s32.totalorder %s23, 3
        %s248 = scalar_select %p247, %s23, 3
        %s249 = scalar_lea.vmem %s3, %s248
        %p250 = pneg %p155
        %p251 = pneg %p152
        %p252 = scmp.lt.s32.totalorder %s23, 3
        %s253 = scalar_select %p252, %s23, 3
        %s254 = scalar_lea.vmem %s4, %s253
        %s255 = smul.u32 2, %s24
        %s256 = smul.u32 2, %s24
        %p257 = scmp.lt.s32.totalorder %s23, 3
        %s258 = scalar_select %p257, %s23, 3
        %p259 = scmp.lt.s32.totalorder %s256, 1
        %s260 = scalar_select %p259, %s256, 1
        %s261 = smul.addr %s258, 2
        %s262 = sadd.s32 %s260, %s261
        %s263 = scalar_lea.vmem %s1, %s262
        %s264 = smul.u32 2, %s24
        %p265 = scmp.lt.s32.totalorder %s23, 3
        %s266 = scalar_select %p265, %s23, 3
        %s267 = scalar_lea.vmem %s3, %s266
        %p268 = scmp.lt.s32.totalorder %s23, 3
        %s269 = scalar_select %p268, %s23, 3
        %s270 = scalar_lea.vmem %s4, %s269
        %p271 = scmp.eq.s32.totalorder %s24, 0
        // Predicated region
        $region37: #{tpu_custom_call.1} parent=31 // pred_check
          %p272 = pneg %p271
        $region38: #{tpu_custom_call.1} parent=31 // pred_check_branch
          %274 = sbr.rel (%p272) target = $region40
        $region39: #{tpu_custom_call.1} parent=31 // pred_region
          %275 = vst [vmem:[#allocation2] sm:$0xff] 0.0
          %276 = vst [vmem:[#allocation3] sm:$0xff] 0.0
        $region40: #{tpu_custom_call.1} parent=31 // pred_fallthru
          _
        %v277 = vld [vmem:[%s221] sm:$0xff]
        %v278 = vld [vmem:[%s263] sm:$0x3]
        %v279 = vld [vmem:[%s2] sm:$0xf]
        %v280 = vlaneseq
        %v281 = vshrl.u32 %v280, 7
        %v282 = vlaneseq
        %v283 = vshrl.u32 %v282, 7
        %v284 = vsub.s32 0, %v283
        %v285 = vrot.slane %v278, %v284
        %v286 = vlaneseq
        %v287 = vshrl.u32 %v286, 7
        %v288 = vsub.s32 1, %v287
        %v289 = vrot.slane %v278, %v288
        %vm290 = vcmp.eq.s32.totalorder %v281, %v285
        %vm291 = vcmp.eq.s32.totalorder %v281, %v289
        %v292 = vsel %vm290, 1, 0
        %v293 = vsel %vm291, 1, 0
        %v294 = vcvt.s32.f32 %v292
        %v295 = vcvt.s32.f32 %v293
        %297 = vset.pattern.permute.xlu0 0
        %298 = vperm.xlu0 %297, %v279
        %v299 = vpop.permute.xlu0 %298
        %v301 = vmul.f32 %v299, %v294
        %v302 = vmul.f32 %v299, %v295
        %v304 = vcombine.high %v277, %v277
        %vm306 = vcmask 1043456
        %v307 = vsel %vm306, %v277, -inf
        %v308 = vrot.slane %v307, 4
        %v309 = vmax.f32 %v307, %v308
        %v310 = vrot.slane %v309, 2
        %v311 = vmax.f32 %v309, %v310
        %v312 = vrot.slane %v311, 1
        %v313 = vmax.f32 %v311, %v312
        %v314 = vsel %vm306, %v304, -inf
        %v315 = vrot.slane %v314, 4
        %v316 = vmax.f32 %v314, %v315
        %v317 = vrot.slane %v316, 2
        %v318 = vmax.f32 %v316, %v317
        %v319 = vrot.slane %v318, 1
        %v320 = vmax.f32 %v318, %v319
        %v323 = vcombine.low %v313, %v320
        %v325 = vsub.f32 %v277, %v323
        %v326 = vmul.f32 %v325, 1.442695
        %v327 = vpow.pop %v326
        %v329 = vcombine.high %v327, %v327
        %v331 = vsel %vm306, %v327, 0.0
        %v332 = vrot.slane %v331, 4
        %v333 = vadd.f32 %v331, %v332
        %v334 = vrot.slane %v333, 2
        %v335 = vadd.f32 %v333, %v334
        %v336 = vrot.slane %v335, 1
        %v337 = vadd.f32 %v335, %v336
        %v338 = vsel %vm306, %v329, 0.0
        %v339 = vrot.slane %v338, 4
        %v340 = vadd.f32 %v338, %v339
        %v341 = vrot.slane %v340, 2
        %v342 = vadd.f32 %v340, %v341
        %v343 = vrot.slane %v342, 1
        %v344 = vadd.f32 %v342, %v343
        %v345 = vlog2.pop %v337
        %v346 = vmul.f32 %v345, 0.6931472
        %v347 = vlog2.pop %v344
        %v348 = vmul.f32 %v347, 0.6931472
        %v349 = vadd.f32 %v346, %v313
        %v350 = vadd.f32 %v348, %v320
        %v351 = vld [vmem:[#allocation2] sm:$0xff]
        %v352 = vsub.f32 %v349, %v277
        %v353 = vsub.f32 %v350, %v304
        %v354 = vmul.f32 %v301, %v352
        %v355 = vmul.f32 %v302, %v353
        %v358 = vcombine.low %v354, %v355
        %v360 = vadd.f32 %v351, %v358
        %361 = vst [vmem:[#allocation2] sm:$0xff] %v360
        %v362 = vld [vmem:[#allocation3] sm:$0xff]
        %v365 = vcombine.low %v301, %v302
        %v367 = vadd.f32 %v362, %v365
        %368 = vst [vmem:[#allocation3] sm:$0xff] %v367
        // Predicated region
        $region41: #{tpu_custom_call.1} parent=31 // pred_check
          %p369 = pneg %p271
        $region42: #{tpu_custom_call.1} parent=31 // pred_check_branch
          %371 = sbr.rel (%p369) target = $region44
        $region43: #{tpu_custom_call.1} parent=31 // pred_region
          %v372 = vld [vmem:[#allocation2] sm:$0xff]
          %v374 = vcombine.high %v372, %v372
          %v376 = vsel %vm306, %v372, 0.0
          %v377 = vsel %vm306, %v374, 0.0
          %v378 = vadd.f32 %v376, %v377
          %379 = vadd.xlane.f32.xlu0 %v378
          %v380 = vpop.xlane.xlu0 %379
          %v381 = vrot.slane %v380, 4
          %v382 = vadd.f32 %v380, %v381
          %v383 = vrot.slane %v382, 2
          %v384 = vadd.f32 %v382, %v383
          %v385 = vrot.slane %v384, 1
          %v386 = vadd.f32 %v384, %v385
          %s387 = vtos %v386
          %v388 = vstv %s387
          %vm389 = vcmask 0
          %390 = vst.msk [vmem:[%s267] sm:$0x1] %vm389, %v388
          %v391 = vld [vmem:[#allocation3] sm:$0xff]
          %v393 = vcombine.high %v391, %v391
          %v395 = vsel %vm306, %v391, 0.0
          %v396 = vsel %vm306, %v393, 0.0
          %v397 = vadd.f32 %v395, %v396
          %398 = vadd.xlane.f32.xlu0 %v397
          %v399 = vpop.xlane.xlu0 %398
          %v400 = vrot.slane %v399, 4
          %v401 = vadd.f32 %v399, %v400
          %v402 = vrot.slane %v401, 2
          %v403 = vadd.f32 %v401, %v402
          %v404 = vrot.slane %v403, 1
          %v405 = vadd.f32 %v403, %v404
          %s406 = vtos %v405
          %v407 = vstv %s406
          %408 = vst.msk [vmem:[%s270] sm:$0x1] %vm389, %v407
        $region44: #{tpu_custom_call.1} parent=31 // pred_fallthru
          _
        %p409 = scmp.lt.s32.totalorder %s23, 3
        %s410 = scalar_select %p409, %s23, 3
        %s411 = scalar_lea.vmem %s3, %s410
        %p412 = scmp.lt.s32.totalorder %s23, 3
        %s413 = scalar_select %p412, %s23, 3
        %s414 = scalar_lea.vmem %s4, %s413
        // Predicated region
        $region45: #{tpu_custom_call.1} parent=31 // pred_check
          %p415 = pneg %p126
        $region46: #{tpu_custom_call.1} parent=31 // pred_check_branch
          %417 = sbr.rel (%p415) target = $region48
        $region47: #{tpu_custom_call.1} parent=31 // pred_region
          _
        $region48: #{tpu_custom_call.1} parent=31 // pred_fallthru
          _
        // Predicated region
        $region49: #{tpu_custom_call.1} parent=31 // pred_check
          %p418 = pneg %p152
        $region50: #{tpu_custom_call.1} parent=31 // pred_check_branch
          %420 = sbr.rel (%p418) target = $region52
        $region51: #{tpu_custom_call.1} parent=31 // pred_region
          _
        $region52: #{tpu_custom_call.1} parent=31 // pred_fallthru
          _
      $region32: #{tpu_custom_call.1} parent=5 // pred_fallthru
        _
      %p421 = scmp.le.s32.totalorder 2, %s14
      // Predicated region
      $region53: #{tpu_custom_call.1} parent=5 // pred_check
        %p422 = pneg %p421
      $region54: #{tpu_custom_call.1} parent=5 // pred_check_branch
        %424 = sbr.rel (%p422) target = $region56
      $region55: #{tpu_custom_call.1} parent=5 // pred_region
        %s425 = ssub.s32 %s14, 2
        // Predicated region
        $region57: #{tpu_custom_call.1} parent=55 // pred_check
          %p426 = pneg %p132
        $region58: #{tpu_custom_call.1} parent=55 // pred_check_branch
          %428 = sbr.rel (%p426) target = $region60
        $region59: #{tpu_custom_call.1} parent=55 // pred_region
          %p429 = scmp.lt.s32.totalorder %s25, 3
          %s430 = scalar_select %p429, %s25, 3
          %s431 = scalar_lea.vmem %s3, %s430
        $region60: #{tpu_custom_call.1} parent=55 // pred_fallthru
          _
        // Predicated region
        $region61: #{tpu_custom_call.1} parent=55 // pred_check
          %p432 = pneg %p158
        $region62: #{tpu_custom_call.1} parent=55 // pred_check_branch
          %434 = sbr.rel (%p432) target = $region64
        $region63: #{tpu_custom_call.1} parent=55 // pred_region
          %p435 = scmp.lt.s32.totalorder %s25, 3
          %s436 = scalar_select %p435, %s25, 3
          %s437 = scalar_lea.vmem %s4, %s436
        $region64: #{tpu_custom_call.1} parent=55 // pred_fallthru
          _
      $region56: #{tpu_custom_call.1} parent=5 // pred_fallthru
        _
    $region6: #{tpu_custom_call.1} parent=1 // loop_footer
      %s18 = sadd.s32 1, %s14
    $region7: #{tpu_custom_call.1} parent=1 // loop_footer_branch
      %13 = sbr.rel target = $region3
    $region8: #{tpu_custom_call.1} parent=1 // loop_exit
      _
    %438 = vsyncpa [#allocation5], 1
    %s439 = scalar_lea.sflag [#allocation5], 1
    %440 = vsyncpa %s439, 1

</llo_original>
